<compile_context>
chip_gen: v7x
topology: tpu7x:2x2x1
jax: 0.10.0
libtpu: 0.0.40
codegen_flags: <defaults>
</compile_context>

<pallas_src>
import functools

import jax
import jax.numpy as jnp
from jax.experimental import pallas as pl
from jax.experimental.pallas import tpu as pltpu

_LANE = 128
_SUBLANE = 8
_TR_CAP = 2048                  # per-class output block = TR * 128 * 4 B = 1 MiB
_DEPTH_BLOCK_BUDGET = 2 << 20   # emit all classes per step if block stays <= 2 MiB


def _one_hot_lane_rows_kernel(labels_ref, out_ref):
    """labels_ref: (1, TR, 128) int32 ; out_ref: (1, DC, TR, 128) float32.

    Grid is (N, R_tiles, depth_chunks) with the class axis innermost; the label
    block index is independent of the class axis so the tile stays resident in
    VMEM for the whole class sweep.  Stores are (TR, 128) sublane/lane-dense.
    """
    _, dc, tr, lane = out_ref.shape
    d0 = pl.program_id(2) * dc
    cls = d0 + jax.lax.broadcasted_iota(jnp.int32, (dc, tr, lane), 0)
    oh = (cls == labels_ref[0][None, :, :]).astype(jnp.float32)   # (DC, TR, 128)
    out_ref[...] = oh[None]


def _one_hot_depth_rows_kernel(labels_ref, out_ref):
    """Fallback: labels_ref: (1, 1, T) int32 ; out_ref: (1, depth, T) float32."""
    _, depth, t = out_ref.shape
    cls = jax.lax.broadcasted_iota(jnp.int32, (1, depth, t), 1)
    out_ref[...] = (cls == labels_ref[...]).astype(jnp.float32)


def _one_hot_lane_rows(labels_2d, depth):
    """labels_2d: (N, M) int32 with M % 128 == 0  ->  (N, depth, M) float32."""
    n, m = labels_2d.shape
    r = m // _LANE
    labels_3d = labels_2d.reshape(n, r, _LANE)

    tr = min(r, _TR_CAP)
    if r >= _SUBLANE:
        tr = max(_SUBLANE, (tr // _SUBLANE) * _SUBLANE)   # full-vreg stores
    # All classes per step while the block stays small; otherwise one class per
    # step (each per-class block is already ~1 MiB, so overhead is amortised).
    dc = depth if depth * tr * _LANE * 4 <= _DEPTH_BLOCK_BUDGET else 1

    grid = (n, pl.cdiv(r, tr), pl.cdiv(depth, dc))
    out = pl.pallas_call(
        _one_hot_lane_rows_kernel,
        out_shape=jax.ShapeDtypeStruct((n, depth, r, _LANE), jnp.float32),
        grid=grid,
        in_specs=[pl.BlockSpec((1, tr, _LANE), lambda ni, ri, di: (ni, ri, 0))],
        out_specs=pl.BlockSpec((1, dc, tr, _LANE),
                               lambda ni, ri, di: (ni, di, ri, 0)),
        compiler_params=pltpu.CompilerParams(
            dimension_semantics=("parallel", "parallel", "arbitrary")),
    )(labels_3d)
    return out.reshape(n, depth, m)   # free: merges contiguous trailing dims


def _one_hot_depth_rows(labels_2d, depth):
    """Fallback for M not a multiple of 128: labels (N, M) -> (N, depth, M)."""
    n, m = labels_2d.shape
    t = max(_LANE, ((_DEPTH_BLOCK_BUDGET // (4 * depth)) // _LANE) * _LANE)
    if t >= m:
        t = m                          # full-row block (always layout-legal)
    grid = (n, pl.cdiv(m, t))
    return pl.pallas_call(
        _one_hot_depth_rows_kernel,
        out_shape=jax.ShapeDtypeStruct((n, depth, m), jnp.float32),
        grid=grid,
        in_specs=[pl.BlockSpec((1, 1, t), lambda ni, ti: (ni, 0, ti))],
        out_specs=pl.BlockSpec((1, depth, t), lambda ni, ti: (ni, 0, ti)),
        compiler_params=pltpu.CompilerParams(
            dimension_semantics=("parallel", "parallel")),
    )(labels_2d.reshape(n, 1, m))


@functools.partial(jax.jit, static_argnums=(1,))
def one_hot_forward(x_in, depth):
    """Replicates One_Hot(depth).forward(X_in).

    x_in: integer label map, e.g. (N, 1, H, W).  Returns float32 matching
    torch: one_hot(x) -> permute depth to axis 1 -> squeeze(dim=2).
    """
    shape = x_in.shape
    assert x_in.ndim >= 2, "One_Hot expects at least a 2-D label tensor"
    n = shape[0]
    m_rest = 1
    for s in shape[1:]:
        m_rest *= s

    labels = jnp.reshape(x_in, (n, m_rest)).astype(jnp.int32)

    if m_rest % _LANE == 0:
        oh = _one_hot_lane_rows(labels, depth)      # (N, depth, M)
    else:
        oh = _one_hot_depth_rows(labels, depth)     # (N, depth, M)

    oh = jnp.reshape(oh, (n, depth) + shape[1:])    # free reshape
    if shape[1] == 1:                               # torch .squeeze(dim=2)
        oh = jnp.squeeze(oh, axis=2)
    return oh


if __name__ == "__main__":
    depth = 4
    key = jax.random.PRNGKey(0)
    # NCHW label map with a singleton channel, values in [0, depth)
    x = jax.random.randint(key, (2, 1, 16, 16), 0, depth, dtype=jnp.int32)

    out = jax.block_until_ready(one_hot_forward(x, depth))

    # Reference in plain JAX (same semantics as the torch module).
    def ref_one_hot(xa, d):
        r = jax.nn.one_hot(xa.reshape(-1), d, dtype=jnp.float32)
        r = r.reshape(xa.shape + (d,))
        perm = (0, xa.ndim) + tuple(range(1, xa.ndim))
        r = jnp.transpose(r, perm)
        return jnp.squeeze(r, axis=2) if xa.shape[1] == 1 else r

    ref = ref_one_hot(x, depth)
    assert out.shape == (2, depth, 16, 16), out.shape
    assert out.dtype == jnp.float32
    assert bool(jnp.all(out == ref))

    # Also exercise the non-lane-aligned fallback path (H*W not % 128 == 0).
    x2 = jax.random.randint(jax.random.PRNGKey(1), (2, 1, 10, 10), 0, depth,
                            dtype=jnp.int32)
    out2 = jax.block_until_ready(one_hot_forward(x2, depth))
    assert out2.shape == (2, depth, 10, 10), out2.shape
    assert bool(jnp.all(out2 == ref_one_hot(x2, depth)))

    print("KERNEL_OK")
</pallas_src>

<mosaic_0001>
module attributes {stable_mosaic.version = 11 : i64} {
  func.func @_one_hot_lane_rows_kernel(%arg0: i32, %arg1: i32, %arg2: i32, %arg3: memref<1x2x128xi32, #tpu.memory_space<vmem>>, %arg4: memref<1x4x2x128xf32, #tpu.memory_space<vmem>>) attributes {dimension_semantics = [#tpu.dimension_semantics<parallel>, #tpu.dimension_semantics<parallel>, #tpu.dimension_semantics<arbitrary>], iteration_bounds = array<i64: 2, 1, 1>, scalar_prefetch = 0 : i64, scratch_operands = 0 : i64, tpu.core_type = #tpu.core_type<tc>, window_params = [{transform_indices = @transform_0, window_bounds = array<i64: 1, 2, 128>}, {transform_indices = @transform_1, window_bounds = array<i64: 1, 4, 2, 128>}]} {
    %c4_i32 = arith.constant 4 : i32
    %0 = arith.muli %arg2, %c4_i32 : i32
    %1 = tpu.iota {dimensions = array<i32: 0>} : vector<4x2x128xi32>
    %2 = vector.broadcast %0 : i32 to vector<4x2x128xi32>
    %3 = arith.addi %2, %1 : vector<4x2x128xi32>
    %c0 = arith.constant 0 : index
    %c0_0 = arith.constant 0 : index
    %c0_1 = arith.constant 0 : index
    %4 = vector.load %arg3[%c0, %c0_0, %c0_1] : memref<1x2x128xi32, #tpu.memory_space<vmem>>, vector<1x2x128xi32>
    %5 = vector.shape_cast %4 : vector<1x2x128xi32> to vector<2x128xi32>
    %6 = vector.shape_cast %5 : vector<2x128xi32> to vector<1x2x128xi32>
    %7 = vector.broadcast %6 : vector<1x2x128xi32> to vector<4x2x128xi32>
    %8 = arith.cmpi eq, %3, %7 : vector<4x2x128xi32>
    %9 = arith.extui %8 : vector<4x2x128xi1> to vector<4x2x128xi32>
    %10 = arith.sitofp %9 : vector<4x2x128xi32> to vector<4x2x128xf32>
    %11 = vector.shape_cast %10 : vector<4x2x128xf32> to vector<1x4x2x128xf32>
    %c0_2 = arith.constant 0 : index
    %c0_3 = arith.constant 0 : index
    %c0_4 = arith.constant 0 : index
    %c0_5 = arith.constant 0 : index
    %12 = vector.load %arg4[%c0_2, %c0_3, %c0_4, %c0_5] : memref<1x4x2x128xf32, #tpu.memory_space<vmem>>, vector<1x4x2x128xf32>
    tpu.vector_store %arg4[%c0_2, %c0_3, %c0_4, %c0_5], %11 {strides = array<i32>} : memref<1x4x2x128xf32, #tpu.memory_space<vmem>>, vector<1x4x2x128xf32>,
    return
  }
  func.func @transform_0(%arg0: i32, %arg1: i32, %arg2: i32) -> (i32, i32, i32) {
    %c0_i32 = arith.constant 0 : i32
    %c0_i32_0 = arith.constant 0 : i32
    return %arg0, %arg1, %c0_i32 : i32, i32, i32
  }
  func.func @transform_1(%arg0: i32, %arg1: i32, %arg2: i32) -> (i32, i32, i32, i32) {
    %c0_i32 = arith.constant 0 : i32
    %c0_i32_0 = arith.constant 0 : i32
    return %arg0, %arg2, %arg1, %c0_i32 : i32, i32, i32, i32
  }
}

</mosaic_0001>

<llo_original>
// kernel: one_hot_forward.1
$region0: #{one_hot_forward.1}
  #allocation0 [shape = 'u32[]', space=smem, size = 0x4, offset = 0x4, fixed_abs, tag = 'smem constant byte address 0x4 - core index']
  #allocation1 [shape = 'u32[144,128]{1,0:T(1,128)}', space=vmem, size = 0x12000, scoped, tag = 'internal scratch']
  %s0 = inlined_call_operand.vmem [shape: s32[2,2,128], index: 0, kind: input, shape index: {}]
  %s1 = inlined_call_operand.vmem [shape: f32[2,4,2,128], index: 1, kind: output, shape index: {}]
  %s2 = sld [smem:[#allocation0]]
  $region37: #{one_hot_forward.1} parent=0
    _
  %s4 = ssub.s32 1, %s2
  %s5 = scalar_select 0, %s4, %s2
  loop: start=0, step=1, limit=4
  $region2: #{one_hot_forward.1} parent=0 // loop_pre_header
    _
  $region3: #{one_hot_forward.1} parent=0 // loop_header
    %s7 = sphi 0, %s11
    %p8 = scmp.ge.s32.totalorder %s7, 4
    %s14 = sphi 0, %s33
    %s15 = sphi 0, %s29
    %s16 = sphi 0, %s25
    %s17 = sphi 0, %s14
    %s18 = sphi 0, %s15
    %s19 = sphi 0, %s16
    %s20 = sphi 0, %s17
    %s21 = sphi 0, %s18
    %s22 = sphi 0, %s19
    %s38 = sphi 0, %s40
    %s41 = sphi 0, %s38
    %s42 = sphi 0, %s41
    %s58 = sphi 0, %s42
    %s68 = sphi 0, %s70
    %s71 = sphi 0, %s68
    %s72 = sphi 0, %s71
    %s88 = sphi 0, %s72
  $region4: #{one_hot_forward.1} parent=0 // loop_header_branch
    %10 = sbr.rel (%p8) target = $region8
  $region5: #{one_hot_forward.1} parent=0 // loop_body
    %s12 = ssub.s32 %s7, 1
    %s13 = ssub.s32 %s7, 2
    %s23 = sadd.s32 1, %s16
    %p24 = scmp.ge.s32.totalorder %s23, 1
    %s25 = scalar_select %p24, 0, %s23
    %s26 = sadd.s32 1, %s15
    %s27 = scalar_select %p24, %s26, %s15
    %p28 = scmp.ge.s32.totalorder %s27, 1
    %s29 = scalar_select %p28, 0, %s27
    %s30 = sadd.s32 1, %s14
    %s31 = scalar_select %p28, %s30, %s14
    %p32 = scmp.ge.s32.totalorder %s31, 2
    %s33 = scalar_select %p32, 0, %s31
    %s34 = ssub.s32 %s14, %s33
    %s35 = ssub.s32 %s15, %s29
    %s36 = sor.u32 %s34, %s35
    %p37 = scmp.eq.s32.totalorder %s36, 0
    %s39 = sadd.s32 %s38, 1
    %s40 = scalar_select %p37, %s38, %s39
    %p43 = pneg %p37
    %p44 = scmp.eq.s32.totalorder %s7, 1
    %p45 = por %p43, %p44
    %p46 = scmp.ne.s32.totalorder %s38, %s41
    %p47 = scmp.eq.s32.totalorder %s7, 0
    %p48 = por %p46, %p47
    %p49 = scmp.ne.s32.totalorder %s38, %s41
    %p50 = scmp.eq.s32.totalorder %s12, 1
    %p51 = por %p49, %p50
    %p52 = scmp.ne.s32.totalorder %s41, %s42
    %p53 = scmp.eq.s32.totalorder %s12, 0
    %p54 = por %p52, %p53
    %p55 = scmp.ne.s32.totalorder %s41, %s42
    %p56 = scmp.eq.s32.totalorder %s13, 1
    %p57 = por %p55, %p56
    %p59 = scmp.ne.s32.totalorder %s42, %s58
    %p60 = scmp.eq.s32.totalorder %s13, 0
    %p61 = por %p59, %p60
    %s62 = ssub.s32 %s14, %s33
    %s63 = ssub.s32 %s16, %s25
    %s64 = sor.u32 %s62, %s63
    %s65 = ssub.s32 %s15, %s29
    %s66 = sor.u32 %s64, %s65
    %p67 = scmp.eq.s32.totalorder %s66, 0
    %s69 = sadd.s32 %s68, 1
    %s70 = scalar_select %p67, %s68, %s69
    %p73 = pneg %p67
    %p74 = scmp.eq.s32.totalorder %s7, 1
    %p75 = por %p73, %p74
    %p76 = scmp.ne.s32.totalorder %s68, %s71
    %p77 = scmp.eq.s32.totalorder %s7, 0
    %p78 = por %p76, %p77
    %p79 = scmp.ne.s32.totalorder %s68, %s71
    %p80 = scmp.eq.s32.totalorder %s12, 1
    %p81 = por %p79, %p80
    %p82 = scmp.ne.s32.totalorder %s71, %s72
    %p83 = scmp.eq.s32.totalorder %s12, 0
    %p84 = por %p82, %p83
    %p85 = scmp.ne.s32.totalorder %s71, %s72
    %p86 = scmp.eq.s32.totalorder %s13, 1
    %p87 = por %p85, %p86
    %p89 = scmp.ne.s32.totalorder %s72, %s88
    %p90 = scmp.eq.s32.totalorder %s13, 0
    %p91 = por %p89, %p90
    %p92 = scmp.le.s32.totalorder 1, %s7
    %p93 = scmp.lt.s32.totalorder %s7, 3
    %p94 = pnand %p92, %p93
    %p95 = pneg %p94
    // Predicated region
    $region9: #{one_hot_forward.1} parent=5 // pred_check
      _
    $region10: #{one_hot_forward.1} parent=5 // pred_check_branch
      %97 = sbr.rel (%p94) target = $region12
    $region11: #{one_hot_forward.1} parent=5 // pred_region
      %s98 = ssub.s32 %s7, 1
    $region12: #{one_hot_forward.1} parent=5 // pred_fallthru
      _
    %p99 = scmp.lt.s32.totalorder %s7, 2
    // Predicated region
    $region13: #{one_hot_forward.1} parent=5 // pred_check
      %p100 = pneg %p99
    $region14: #{one_hot_forward.1} parent=5 // pred_check_branch
      %102 = sbr.rel (%p100) target = $region16
    $region15: #{one_hot_forward.1} parent=5 // pred_region
      // Predicated region
      $region17: #{one_hot_forward.1} parent=15 // pred_check
        %p103 = pneg %p48
      $region18: #{one_hot_forward.1} parent=15 // pred_check_branch
        %105 = sbr.rel (%p103) target = $region20
      $region19: #{one_hot_forward.1} parent=15 // pred_region
        %p106 = scmp.lt.s32.totalorder %s14, 1
        %s107 = scalar_select %p106, %s14, 1
        %p108 = scmp.lt.s32.totalorder %s15, 0
        %s109 = scalar_select %p108, %s15, 0
        %s110 = sadd.s32 %s109, %s107
        %s111 = smul.addr %s110, 2
        %s112 = scalar_lea.vmem %s0, %s111
      $region20: #{one_hot_forward.1} parent=15 // pred_fallthru
        _
    $region16: #{one_hot_forward.1} parent=5 // pred_fallthru
      _
    %p113 = scmp.le.s32.totalorder 1, %s7
    %p114 = scmp.lt.s32.totalorder %s7, 3
    %p115 = pnand %p113, %p114
    %p116 = pneg %p115
    // Predicated region
    $region21: #{one_hot_forward.1} parent=5 // pred_check
      _
    $region22: #{one_hot_forward.1} parent=5 // pred_check_branch
      %118 = sbr.rel (%p115) target = $region24
    $region23: #{one_hot_forward.1} parent=5 // pred_region
      %s119 = ssub.s32 %s7, 1
      %p120 = scmp.lt.s32.totalorder %s17, 1
      %s121 = scalar_select %p120, %s17, 1
      %p122 = scmp.lt.s32.totalorder %s18, 0
      %s123 = scalar_select %p122, %s18, 0
      %s124 = sadd.s32 %s123, %s121
      %s125 = smul.addr %s124, 2
      %s126 = scalar_lea.vmem %s0, %s125
      %p127 = pneg %p54
      %p128 = pneg %p51
      %p129 = pneg %p84
      %p130 = pneg %p81
      %s131 = smul.u32 4, %s19
      %p132 = scmp.lt.s32.totalorder %s17, 1
      %s133 = scalar_select %p132, %s17, 1
      %p134 = scmp.lt.s32.totalorder %s131, 3
      %s135 = scalar_select %p134, %s131, 3
      %p136 = scmp.lt.s32.totalorder %s18, 0
      %s137 = scalar_select %p136, %s18, 0
      %s138 = sadd.s32 %s137, %s135
      %s139 = smul.addr %s133, 4
      %s140 = sadd.s32 %s138, %s139
      %s141 = smul.addr %s140, 2
      %s142 = scalar_lea.vmem %s1, %s141
      %p143 = scmp.lt.s32.totalorder %s17, 1
      %s144 = scalar_select %p143, %s17, 1
      %p145 = scmp.lt.s32.totalorder %s18, 0
      %s146 = scalar_select %p145, %s18, 0
      %s147 = sadd.s32 %s146, %s144
      %s148 = smul.addr %s147, 2
      %s149 = scalar_lea.vmem %s0, %s148
      %s150 = smul.u32 4, %s19
      %p151 = scmp.lt.s32.totalorder %s17, 1
      %s152 = scalar_select %p151, %s17, 1
      %p153 = scmp.lt.s32.totalorder %s150, 3
      %s154 = scalar_select %p153, %s150, 3
      %p155 = scmp.lt.s32.totalorder %s18, 0
      %s156 = scalar_select %p155, %s18, 0
      %s157 = sadd.s32 %s156, %s154
      %s158 = smul.addr %s152, 4
      %s159 = sadd.s32 %s157, %s158
      %s160 = smul.addr %s159, 2
      %s161 = scalar_lea.vmem %s1, %s160
      %s162 = smul.u32 4, %s19
      %s163 = smul.u32 %s19, 4
      %v164 = vstv %s163
      %v165 = vadd.s32 %v164, 1
      %v166 = vadd.s32 %v164, 2
      %v167 = vadd.s32 %v164, 3
      %v168 = vld [vmem:[%s149] sm:$0x3]
      %vm169 = vcmp.eq.s32.totalorder %v164, %v168
      %vm170 = vcmp.eq.s32.totalorder %v165, %v168
      %vm171 = vcmp.eq.s32.totalorder %v166, %v168
      %vm172 = vcmp.eq.s32.totalorder %v167, %v168
      %v173 = vsel %vm169, 1, 0
      %v174 = vsel %vm170, 1, 0
      %v175 = vsel %vm171, 1, 0
      %v176 = vsel %vm172, 1, 0
      %v177 = vcvt.s32.f32 %v173
      %v178 = vcvt.s32.f32 %v174
      %v179 = vcvt.s32.f32 %v175
      %v180 = vcvt.s32.f32 %v176
      %181 = vst [vmem:[%s161] sm:$0x3] %v177
      %182 = vst [vmem:[%s161 + $0x2] sm:$0x3] %v178
      %183 = vst [vmem:[%s161 + $0x4] sm:$0x3] %v179
      %184 = vst [vmem:[%s161 + $0x6] sm:$0x3] %v180
      %s185 = smul.u32 4, %s19
      %p186 = scmp.lt.s32.totalorder %s17, 1
      %s187 = scalar_select %p186, %s17, 1
      %p188 = scmp.lt.s32.totalorder %s185, 3
      %s189 = scalar_select %p188, %s185, 3
      %p190 = scmp.lt.s32.totalorder %s18, 0
      %s191 = scalar_select %p190, %s18, 0
      %s192 = sadd.s32 %s191, %s189
      %s193 = smul.addr %s187, 4
      %s194 = sadd.s32 %s192, %s193
      %s195 = smul.addr %s194, 2
      %s196 = scalar_lea.vmem %s1, %s195
      // Predicated region
      $region25: #{one_hot_forward.1} parent=23 // pred_check
        %p197 = pneg %p81
      $region26: #{one_hot_forward.1} parent=23 // pred_check_branch
        %199 = sbr.rel (%p197) target = $region28
      $region27: #{one_hot_forward.1} parent=23 // pred_region
        %s200 = smul.u32 4, %s19
      $region28: #{one_hot_forward.1} parent=23 // pred_fallthru
        _
    $region24: #{one_hot_forward.1} parent=5 // pred_fallthru
      _
    %p201 = scmp.le.s32.totalorder 2, %s7
    // Predicated region
    $region29: #{one_hot_forward.1} parent=5 // pred_check
      %p202 = pneg %p201
    $region30: #{one_hot_forward.1} parent=5 // pred_check_branch
      %204 = sbr.rel (%p202) target = $region32
    $region31: #{one_hot_forward.1} parent=5 // pred_region
      %s205 = ssub.s32 %s7, 2
      // Predicated region
      $region33: #{one_hot_forward.1} parent=31 // pred_check
        %p206 = pneg %p87
      $region34: #{one_hot_forward.1} parent=31 // pred_check_branch
        %208 = sbr.rel (%p206) target = $region36
      $region35: #{one_hot_forward.1} parent=31 // pred_region
        %s209 = smul.u32 4, %s22
        %p210 = scmp.lt.s32.totalorder %s20, 1
        %s211 = scalar_select %p210, %s20, 1
        %p212 = scmp.lt.s32.totalorder %s209, 3
        %s213 = scalar_select %p212, %s209, 3
        %p214 = scmp.lt.s32.totalorder %s21, 0
        %s215 = scalar_select %p214, %s21, 0
        %s216 = sadd.s32 %s215, %s213
        %s217 = smul.addr %s211, 4
        %s218 = sadd.s32 %s216, %s217
        %s219 = smul.addr %s218, 2
        %s220 = scalar_lea.vmem %s1, %s219
      $region36: #{one_hot_forward.1} parent=31 // pred_fallthru
        _
    $region32: #{one_hot_forward.1} parent=5 // pred_fallthru
      _
  $region6: #{one_hot_forward.1} parent=0 // loop_footer
    %s11 = sadd.s32 1, %s7
  $region7: #{one_hot_forward.1} parent=0 // loop_footer_branch
    %6 = sbr.rel target = $region3
  $region8: #{one_hot_forward.1} parent=0 // loop_exit
    _

</llo_original>
